<compile_context>
chip_gen: v7x
topology: tpu7x:2x2x1
jax: 0.10.0
libtpu: 0.0.40
codegen_flags: <defaults>
</compile_context>

<pallas_src>
import functools

import jax
import jax.numpy as jnp
from jax.experimental import pallas as pl
from jax.experimental.pallas import tpu as pltpu


def _round_up(a, b):
    return (a + b - 1) // b * b


def _attn_agg_kernel(n_valid, tn, needs_mask,
                     x_ref, w1_ref, b1_ref, wa1_ref, ba1_ref, wa2_ref,
                     m_ref, s_ref,
                     max_sc, den_sc, acc_sc):
    i = pl.program_id(0)

    @pl.when(i == 0)
    def _init():
        max_sc[...] = jnp.full_like(max_sc, -1e30)
        den_sc[...] = jnp.zeros_like(den_sc)
        acc_sc[...] = jnp.zeros_like(acc_sc)

    # fc1: Linear -> (Dropout: identity at inference) -> ReLU
    h = jnp.dot(x_ref[...], w1_ref[...],
                preferred_element_type=jnp.float32) + b1_ref[...]
    h = jnp.maximum(h, 0.0)                                        # (tn, L) f32

    # attention: Linear -> (Dropout) -> Tanh -> Linear(D->1) -> (Dropout)
    t = jnp.tanh(jnp.dot(h, wa1_ref[...],
                         preferred_element_type=jnp.float32) + ba1_ref[...])  # (tn, D)
    # D->1 projection as a VPU broadcast-multiply + lane reduce (no 1-wide MXU
    # result); ba2 is folded out (softmax shift invariance).
    s_col = jnp.sum(t * wa2_ref[...], axis=-1, keepdims=True)      # (tn, 1)
    s_row = jnp.transpose(s_col)                                   # (1, tn) lane-dense

    if needs_mask:
        ids = i * tn + jax.lax.broadcasted_iota(jnp.int32, (1, tn), 1)
        s_row = jnp.where(ids < n_valid, s_row, -1e30)

    s_ref[...] = s_row.astype(s_ref.dtype)                         # lane-dense store

    # Online-softmax accumulation of m = softmax(s) @ h across the N tiles.
    m_prev = max_sc[...]                                           # (1, 1)
    m_new = jnp.maximum(m_prev, jnp.max(s_row, axis=-1, keepdims=True))
    alpha = jnp.exp(m_prev - m_new)
    p_row = jnp.exp(s_row - m_new)                                 # (1, tn)
    den_sc[...] = alpha * den_sc[...] + jnp.sum(p_row, axis=-1, keepdims=True)
    acc_sc[...] = alpha * acc_sc[...] + jnp.dot(
        p_row, h, preferred_element_type=jnp.float32)              # (1, L)
    max_sc[...] = m_new

    @pl.when(i == pl.num_programs(0) - 1)
    def _finalize():
        # single divide at finalize (precision matters more than speed here)
        m_ref[...] = (acc_sc[...] / den_sc[...]).astype(m_ref.dtype)


def attention_aggregator(x, params, *, block_n=1024, vmem_limit_bytes=None):
    """x: (..., in_features); returns (m: (1, L), a: (1, N)).

    block_n: instance-tile size (multiple of 128).  Streaming x (and weights)
    in bfloat16 halves HBM traffic on v6e/v7x; accumulation stays f32 either way.
    """
    w1, b1 = params["w1"], params["b1"]
    wa1, ba1 = params["wa1"], params["ba1"]
    wa2_row = params["wa2"].reshape(1, -1)     # (1, D); ba2 intentionally unused

    in_features, L = w1.shape
    x2d = x.reshape(-1, in_features)
    n = x2d.shape[0]

    assert block_n % 128 == 0, "block_n must be a multiple of 128"
    tn = min(block_n, _round_up(n, 128))
    n_pad = _round_up(n, tn)
    if n_pad != n:
        x2d = jnp.pad(x2d, ((0, n_pad - n), (0, 0)))
    num_tiles = n_pad // tn

    kernel = functools.partial(_attn_agg_kernel, n, tn, n_pad != n)

    m, s_logits = pl.pallas_call(
        kernel,
        out_shape=(jax.ShapeDtypeStruct((1, L), jnp.float32),
                   jax.ShapeDtypeStruct((1, n_pad), jnp.float32)),
        grid_spec=pltpu.PrefetchScalarGridSpec(
            num_scalar_prefetch=0,
            grid=(num_tiles,),
            in_specs=[
                pl.BlockSpec((tn, in_features), lambda i: (i, 0)),  # stream x tiles
                pl.BlockSpec(w1.shape, lambda i: (0, 0)),           # weights stay
                pl.BlockSpec(b1.shape, lambda i: (0, 0)),           # resident in
                pl.BlockSpec(wa1.shape, lambda i: (0, 0)),          # VMEM across
                pl.BlockSpec(ba1.shape, lambda i: (0, 0)),          # the N grid
                pl.BlockSpec(wa2_row.shape, lambda i: (0, 0)),
            ],
            out_specs=[
                pl.BlockSpec((1, L), lambda i: (0, 0)),    # resident accumulator out
                pl.BlockSpec((1, tn), lambda i: (0, i)),   # lane-dense logits per tile
            ],
            scratch_shapes=[
                pltpu.VMEM((1, 1), jnp.float32),   # running max
                pltpu.VMEM((1, 1), jnp.float32),   # running softmax denominator
                pltpu.VMEM((1, L), jnp.float32),   # rescaled m accumulator
            ]),
        compiler_params=pltpu.CompilerParams(
            dimension_semantics=("arbitrary",),
            vmem_limit_bytes=vmem_limit_bytes),
    )(x2d, w1, b1, wa1, ba1, wa2_row)

    # Final attention weights: O(N) softmax over the bag from the kernel logits.
    a = jax.nn.softmax(s_logits[:, :n], axis=1)
    return m, a


def init_params(key, in_features, inner_feature_size, out_feature_size):
    L, D = out_feature_size, inner_feature_size
    k = jax.random.split(key, 8)
    w1 = jax.random.normal(k[0], (in_features, L), jnp.float32) * (1.0 / jnp.sqrt(in_features))
    b1 = jax.random.normal(k[1], (1, L), jnp.float32) * 0.01
    wa1 = jax.random.normal(k[2], (L, D), jnp.float32) * (1.0 / jnp.sqrt(L))
    ba1 = jax.random.normal(k[3], (1, D), jnp.float32) * 0.01
    wa2 = jax.random.normal(k[4], (D, 1), jnp.float32) * (1.0 / jnp.sqrt(D))
    ba2 = jax.random.normal(k[5], (1, 1), jnp.float32) * 0.01
    return dict(w1=w1, b1=b1, wa1=wa1, ba1=ba1, wa2=wa2, ba2=ba2)


def _reference(x, params):
    """Pure-JAX reference (includes ba2 -> also checks the shift-invariance fold)."""
    x2d = x.reshape(-1, params["w1"].shape[0]).astype(jnp.float32)
    h = jnp.maximum(x2d @ params["w1"] + params["b1"], 0.0)
    t = jnp.tanh(h @ params["wa1"] + params["ba1"])
    s = t @ params["wa2"] + params["ba2"]          # (N, 1)
    a = jax.nn.softmax(s.T, axis=1)                # (1, N)
    m = a @ h                                      # (1, L)
    return m, a


if __name__ == "__main__":
    # Small shapes consistent with the module: a bag of N = B*K instances.
    in_features_size = 32
    inner_feature_size = 64    # D
    out_feature_size = 128     # L
    B, K = 2, 150              # N = 300 -> 3 tiles of 128 (last tile padded/masked)

    key = jax.random.PRNGKey(0)
    kx, kp = jax.random.split(key)
    x = jax.random.normal(kx, (B, K, in_features_size), jnp.float32)
    params = init_params(kp, in_features_size, inner_feature_size, out_feature_size)

    # block_n=128 exercises the multi-tile online-softmax path + padding mask.
    m, a = attention_aggregator(x, params, block_n=128)
    jax.block_until_ready((m, a))

    m_ref, a_ref = _reference(x, params)
    assert m.shape == (1, out_feature_size) and a.shape == (1, B * K)
    assert jnp.allclose(a, a_ref, atol=1e-5, rtol=1e-4), "attention weights mismatch"
    assert jnp.allclose(m, m_ref, atol=5e-4, rtol=5e-4), "aggregated feature mismatch"

    print("KERNEL_OK")
</pallas_src>

<mosaic_0001>
module attributes {stable_mosaic.version = 11 : i64} {
  func.func @_attn_agg_kernel(%arg0: i32, %arg1: memref<128x32xf32, #tpu.memory_space<vmem>>, %arg2: memref<32x128xf32, #tpu.memory_space<vmem>>, %arg3: memref<1x128xf32, #tpu.memory_space<vmem>>, %arg4: memref<128x64xf32, #tpu.memory_space<vmem>>, %arg5: memref<1x64xf32, #tpu.memory_space<vmem>>, %arg6: memref<1x64xf32, #tpu.memory_space<vmem>>, %arg7: memref<1x128xf32, #tpu.memory_space<vmem>>, %arg8: memref<1x128xf32, #tpu.memory_space<vmem>>, %arg9: memref<1x1xf32, #tpu.memory_space<vmem>>, %arg10: memref<1x1xf32, #tpu.memory_space<vmem>>, %arg11: memref<1x128xf32, #tpu.memory_space<vmem>>) attributes {dimension_semantics = [#tpu.dimension_semantics<arbitrary>], iteration_bounds = array<i64: 3>, scalar_prefetch = 0 : i64, scratch_operands = 3 : i64, tpu.core_type = #tpu.core_type<tc>, window_params = [{transform_indices = @transform_0, window_bounds = array<i64: 128, 32>}, {pipeline_mode = #tpu.pipeline_mode<synchronous>, transform_indices = @transform_1, window_bounds = array<i64: 32, 128>}, {pipeline_mode = #tpu.pipeline_mode<synchronous>, transform_indices = @transform_2, window_bounds = array<i64: 1, 128>}, {pipeline_mode = #tpu.pipeline_mode<synchronous>, transform_indices = @transform_3, window_bounds = array<i64: 128, 64>}, {pipeline_mode = #tpu.pipeline_mode<synchronous>, transform_indices = @transform_4, window_bounds = array<i64: 1, 64>}, {pipeline_mode = #tpu.pipeline_mode<synchronous>, transform_indices = @transform_5, window_bounds = array<i64: 1, 64>}, {pipeline_mode = #tpu.pipeline_mode<synchronous>, transform_indices = @transform_6, window_bounds = array<i64: 1, 128>}, {transform_indices = @transform_7, window_bounds = array<i64: 1, 128>}]} {
    %c0_i32 = arith.constant 0 : i32
    %0 = arith.cmpi eq, %arg0, %c0_i32 : i32
    %1 = arith.extui %0 : i1 to i32
    %c0_i32_0 = arith.constant 0 : i32
    %2 = arith.cmpi ne, %1, %c0_i32_0 : i32
    scf.if %2 {
      %cst_34 = arith.constant -1.000000e+30 : f32
      %57 = vector.broadcast %cst_34 : f32 to vector<1x1xf32>
      %c0_35 = arith.constant 0 : index
      %c0_36 = arith.constant 0 : index
      %58 = vector.load %arg9[%c0_35, %c0_36] : memref<1x1xf32, #tpu.memory_space<vmem>>, vector<1x1xf32>
      tpu.vector_store %arg9[%c0_35, %c0_36], %57 {strides = array<i32>} : memref<1x1xf32, #tpu.memory_space<vmem>>, vector<1x1xf32>,
      %cst_37 = arith.constant 0.000000e+00 : f32
      %59 = vector.broadcast %cst_37 : f32 to vector<1x1xf32>
      %c0_38 = arith.constant 0 : index
      %c0_39 = arith.constant 0 : index
      %60 = vector.load %arg10[%c0_38, %c0_39] : memref<1x1xf32, #tpu.memory_space<vmem>>, vector<1x1xf32>
      tpu.vector_store %arg10[%c0_38, %c0_39], %59 {strides = array<i32>} : memref<1x1xf32, #tpu.memory_space<vmem>>, vector<1x1xf32>,
      %cst_40 = arith.constant 0.000000e+00 : f32
      %61 = vector.broadcast %cst_40 : f32 to vector<1x128xf32>
      %c0_41 = arith.constant 0 : index
      %c0_42 = arith.constant 0 : index
      %62 = vector.load %arg11[%c0_41, %c0_42] : memref<1x128xf32, #tpu.memory_space<vmem>>, vector<1x128xf32>
      tpu.vector_store %arg11[%c0_41, %c0_42], %61 {strides = array<i32>} : memref<1x128xf32, #tpu.memory_space<vmem>>, vector<1x128xf32>,
    } else {
    }
    %c0 = arith.constant 0 : index
    %c0_1 = arith.constant 0 : index
    %3 = vector.load %arg1[%c0, %c0_1] : memref<128x32xf32, #tpu.memory_space<vmem>>, vector<128x32xf32>
    %c0_2 = arith.constant 0 : index
    %c0_3 = arith.constant 0 : index
    %4 = vector.load %arg2[%c0_2, %c0_3] : memref<32x128xf32, #tpu.memory_space<vmem>>, vector<32x128xf32>
    %cst = arith.constant dense<0.000000e+00> : vector<128x128xf32>
    %5 = tpu.matmul %3, %4, %cst {dimension_numbers = #tpu.dot_dimension_numbers<[1], [0], [0], [1], [0, 0, 1, 1], [], []>} : vector<128x32xf32>, vector<32x128xf32>, vector<128x128xf32> -> vector<128x128xf32>
    %c0_4 = arith.constant 0 : index
    %c0_5 = arith.constant 0 : index
    %6 = vector.load %arg3[%c0_4, %c0_5] : memref<1x128xf32, #tpu.memory_space<vmem>>, vector<1x128xf32>
    %7 = vector.broadcast %6 : vector<1x128xf32> to vector<128x128xf32>
    %8 = arith.addf %5, %7 : vector<128x128xf32>
    %cst_6 = arith.constant 0.000000e+00 : f32
    %9 = vector.broadcast %cst_6 : f32 to vector<128x128xf32>
    %10 = arith.maximumf %8, %9 : vector<128x128xf32>
    %c0_7 = arith.constant 0 : index
    %c0_8 = arith.constant 0 : index
    %11 = vector.load %arg4[%c0_7, %c0_8] : memref<128x64xf32, #tpu.memory_space<vmem>>, vector<128x64xf32>
    %cst_9 = arith.constant dense<0.000000e+00> : vector<128x64xf32>
    %12 = tpu.matmul %10, %11, %cst_9 {dimension_numbers = #tpu.dot_dimension_numbers<[1], [0], [0], [1], [0, 0, 1, 1], [], []>} : vector<128x128xf32>, vector<128x64xf32>, vector<128x64xf32> -> vector<128x64xf32>
    %c0_10 = arith.constant 0 : index
    %c0_11 = arith.constant 0 : index
    %13 = vector.load %arg5[%c0_10, %c0_11] : memref<1x64xf32, #tpu.memory_space<vmem>>, vector<1x64xf32>
    %14 = vector.broadcast %13 : vector<1x64xf32> to vector<128x64xf32>
    %15 = arith.addf %12, %14 : vector<128x64xf32>
    %16 = math.tanh %15 : vector<128x64xf32>
    %c0_12 = arith.constant 0 : index
    %c0_13 = arith.constant 0 : index
    %17 = vector.load %arg6[%c0_12, %c0_13] : memref<1x64xf32, #tpu.memory_space<vmem>>, vector<1x64xf32>
    %18 = vector.broadcast %17 : vector<1x64xf32> to vector<128x64xf32>
    %19 = arith.mulf %16, %18 : vector<128x64xf32>
    %cst_14 = arith.constant dense<0.000000e+00> : vector<128xf32>
    %20 = vector.multi_reduction <add>, %19, %cst_14 [1] : vector<128x64xf32> to vector<128xf32>
    %21 = vector.shape_cast %20 : vector<128xf32> to vector<128x1xf32>
    %22 = tpu.transpose %21, [1, 0] : vector<128x1xf32> -> vector<1x128xf32>
    %c128_i32 = arith.constant 128 : i32
    %23 = arith.muli %arg0, %c128_i32 : i32
    %24 = tpu.iota {dimensions = array<i32: 1>} : vector<1x128xi32>
    %25 = vector.broadcast %23 : i32 to vector<1x128xi32>
    %26 = arith.addi %25, %24 : vector<1x128xi32>
    %c300_i32 = arith.constant 300 : i32
    %27 = vector.broadcast %c300_i32 : i32 to vector<1x128xi32>
    %28 = arith.cmpi slt, %26, %27 : vector<1x128xi32>
    %cst_15 = arith.constant -1.000000e+30 : f32
    %29 = vector.broadcast %cst_15 : f32 to vector<1x128xf32>
    %30 = arith.select %28, %22, %29 : vector<1x128xi1>, vector<1x128xf32>
    %c0_16 = arith.constant 0 : index
    %c0_17 = arith.constant 0 : index
    %31 = vector.load %arg8[%c0_16, %c0_17] : memref<1x128xf32, #tpu.memory_space<vmem>>, vector<1x128xf32>
    tpu.vector_store %arg8[%c0_16, %c0_17], %30 {strides = array<i32>} : memref<1x128xf32, #tpu.memory_space<vmem>>, vector<1x128xf32>,
    %c0_18 = arith.constant 0 : index
    %c0_19 = arith.constant 0 : index
    %32 = vector.load %arg9[%c0_18, %c0_19] : memref<1x1xf32, #tpu.memory_space<vmem>>, vector<1x1xf32>
    %cst_20 = arith.constant dense<0xFF800000> : vector<1xf32>
    %33 = vector.multi_reduction <maximumf>, %30, %cst_20 [1] : vector<1x128xf32> to vector<1xf32>
    %34 = vector.shape_cast %33 : vector<1xf32> to vector<1x1xf32>
    %35 = arith.maximumf %32, %34 : vector<1x1xf32>
    %36 = arith.subf %32, %35 : vector<1x1xf32>
    %37 = math.exp %36 : vector<1x1xf32>
    %38 = vector.broadcast %35 : vector<1x1xf32> to vector<1x128xf32>
    %39 = arith.subf %30, %38 : vector<1x128xf32>
    %40 = math.exp %39 : vector<1x128xf32>
    %c0_21 = arith.constant 0 : index
    %c0_22 = arith.constant 0 : index
    %41 = vector.load %arg10[%c0_21, %c0_22] : memref<1x1xf32, #tpu.memory_space<vmem>>, vector<1x1xf32>
    %42 = arith.mulf %37, %41 : vector<1x1xf32>
    %cst_23 = arith.constant dense<0.000000e+00> : vector<1xf32>
    %43 = vector.multi_reduction <add>, %40, %cst_23 [1] : vector<1x128xf32> to vector<1xf32>
    %44 = vector.shape_cast %43 : vector<1xf32> to vector<1x1xf32>
    %45 = arith.addf %42, %44 : vector<1x1xf32>
    %c0_24 = arith.constant 0 : index
    %c0_25 = arith.constant 0 : index
    %46 = vector.load %arg10[%c0_24, %c0_25] : memref<1x1xf32, #tpu.memory_space<vmem>>, vector<1x1xf32>
    tpu.vector_store %arg10[%c0_24, %c0_25], %45 {strides = array<i32>} : memref<1x1xf32, #tpu.memory_space<vmem>>, vector<1x1xf32>,
    %c0_26 = arith.constant 0 : index
    %c0_27 = arith.constant 0 : index
    %47 = vector.load %arg11[%c0_26, %c0_27] : memref<1x128xf32, #tpu.memory_space<vmem>>, vector<1x128xf32>
    %48 = vector.broadcast %37 : vector<1x1xf32> to vector<1x128xf32>
    %49 = arith.mulf %48, %47 : vector<1x128xf32>
    %cst_28 = arith.constant dense<0.000000e+00> : vector<1x128xf32>
    %50 = tpu.matmul %40, %10, %cst_28 {dimension_numbers = #tpu.dot_dimension_numbers<[1], [0], [0], [1], [0, 0, 1, 1], [], []>} : vector<1x128xf32>, vector<128x128xf32>, vector<1x128xf32> -> vector<1x128xf32>
    %51 = arith.addf %49, %50 : vector<1x128xf32>
    %c0_29 = arith.constant 0 : index
    %c0_30 = arith.constant 0 : index
    %52 = vector.load %arg11[%c0_29, %c0_30] : memref<1x128xf32, #tpu.memory_space<vmem>>, vector<1x128xf32>
    tpu.vector_store %arg11[%c0_29, %c0_30], %51 {strides = array<i32>} : memref<1x128xf32, #tpu.memory_space<vmem>>, vector<1x128xf32>,
    %c0_31 = arith.constant 0 : index
    %c0_32 = arith.constant 0 : index
    %53 = vector.load %arg9[%c0_31, %c0_32] : memref<1x1xf32, #tpu.memory_space<vmem>>, vector<1x1xf32>
    tpu.vector_store %arg9[%c0_31, %c0_32], %35 {strides = array<i32>} : memref<1x1xf32, #tpu.memory_space<vmem>>, vector<1x1xf32>,
    %c2_i32 = arith.constant 2 : i32
    %54 = arith.cmpi eq, %arg0, %c2_i32 : i32
    %55 = arith.extui %54 : i1 to i32
    %c0_i32_33 = arith.constant 0 : i32
    %56 = arith.cmpi ne, %55, %c0_i32_33 : i32
    scf.if %56 {
      %c0_34 = arith.constant 0 : index
      %c0_35 = arith.constant 0 : index
      %57 = vector.load %arg11[%c0_34, %c0_35] : memref<1x128xf32, #tpu.memory_space<vmem>>, vector<1x128xf32>
      %c0_36 = arith.constant 0 : index
      %c0_37 = arith.constant 0 : index
      %58 = vector.load %arg10[%c0_36, %c0_37] : memref<1x1xf32, #tpu.memory_space<vmem>>, vector<1x1xf32>
      %59 = vector.broadcast %58 : vector<1x1xf32> to vector<1x128xf32>
      %60 = arith.divf %57, %59 : vector<1x128xf32>
      %c0_38 = arith.constant 0 : index
      %c0_39 = arith.constant 0 : index
      %61 = vector.load %arg7[%c0_38, %c0_39] : memref<1x128xf32, #tpu.memory_space<vmem>>, vector<1x128xf32>
      tpu.vector_store %arg7[%c0_38, %c0_39], %60 {strides = array<i32>} : memref<1x128xf32, #tpu.memory_space<vmem>>, vector<1x128xf32>,
    } else {
    }
    return
  }
  func.func @transform_0(%arg0: i32) -> (i32, i32) {
    %c0_i32 = arith.constant 0 : i32
    %c0_i32_0 = arith.constant 0 : i32
    return %arg0, %c0_i32 : i32, i32
  }
  func.func @transform_1(%arg0: i32) -> (i32, i32) {
    %c0_i32 = arith.constant 0 : i32
    %c0_i32_0 = arith.constant 0 : i32
    %c0_i32_1 = arith.constant 0 : i32
    return %c0_i32, %c0_i32_0 : i32, i32
  }
  func.func @transform_2(%arg0: i32) -> (i32, i32) {
    %c0_i32 = arith.constant 0 : i32
    %c0_i32_0 = arith.constant 0 : i32
    %c0_i32_1 = arith.constant 0 : i32
    return %c0_i32, %c0_i32_0 : i32, i32
  }
  func.func @transform_3(%arg0: i32) -> (i32, i32) {
    %c0_i32 = arith.constant 0 : i32
    %c0_i32_0 = arith.constant 0 : i32
    %c0_i32_1 = arith.constant 0 : i32
    return %c0_i32, %c0_i32_0 : i32, i32
  }
  func.func @transform_4(%arg0: i32) -> (i32, i32) {
    %c0_i32 = arith.constant 0 : i32
    %c0_i32_0 = arith.constant 0 : i32
    %c0_i32_1 = arith.constant 0 : i32
    return %c0_i32, %c0_i32_0 : i32, i32
  }
  func.func @transform_5(%arg0: i32) -> (i32, i32) {
    %c0_i32 = arith.constant 0 : i32
    %c0_i32_0 = arith.constant 0 : i32
    %c0_i32_1 = arith.constant 0 : i32
    return %c0_i32, %c0_i32_0 : i32, i32
  }
  func.func @transform_6(%arg0: i32) -> (i32, i32) {
    %c0_i32 = arith.constant 0 : i32
    %c0_i32_0 = arith.constant 0 : i32
    %c0_i32_1 = arith.constant 0 : i32
    return %c0_i32, %c0_i32_0 : i32, i32
  }
  func.func @transform_7(%arg0: i32) -> (i32, i32) {
    %c0_i32 = arith.constant 0 : i32
    %c0_i32_0 = arith.constant 0 : i32
    return %c0_i32, %arg0 : i32, i32
  }
}

</mosaic_0001>

<llo_original>
// kernel: tpu_custom_call.1
$region0: #{tpu_custom_call.1}
  #allocation0 [shape = 'u32[]', space=smem, size = 0x4, offset = 0x4, fixed_abs, tag = 'smem constant byte address 0x4 - core index']
  #allocation1 [shape = 'u32[144,128]{1,0:T(1,128)}', space=vmem, size = 0x12000, scoped, tag = 'internal scratch']
  #allocation2 [shape = 'f32[1,1]{1,0:T(1,128)}', space=vmem, size = 0x200, scoped, tag = 'scratch operand']
  #allocation3 [shape = 'f32[1,1]{1,0:T(1,128)}', space=vmem, size = 0x200, scoped, tag = 'scratch operand']
  #allocation4 [shape = 'f32[1,128]{1,0:T(1,128)}', space=vmem, size = 0x200, scoped, tag = 'scratch operand']
  %s0 = inlined_call_operand.vmem [shape: f32[384,32], index: 0, kind: input, shape index: {}]
  %s1 = inlined_call_operand.vmem [shape: f32[32,128], index: 1, kind: input, shape index: {}]
  %s2 = inlined_call_operand.vmem [shape: f32[1,128], index: 2, kind: input, shape index: {}]
  %s3 = inlined_call_operand.vmem [shape: f32[128,64], index: 3, kind: input, shape index: {}]
  %s4 = inlined_call_operand.vmem [shape: f32[1,64], index: 4, kind: input, shape index: {}]
  %s5 = inlined_call_operand.vmem [shape: f32[1,64], index: 5, kind: input, shape index: {}]
  %s6 = inlined_call_operand.hbm [shape: f32[1,128], index: 6, kind: output, shape index: {0}]
  %s7 = inlined_call_operand.hbm [shape: f32[1,384], index: 7, kind: output, shape index: {1}]
  %8 = xla_tuple %s6, %s7
  %s9 = sld [smem:[#allocation0]]
  $region73: #{tpu_custom_call.1} parent=0
    _
  %s11 = ssub.s32 1, %s9
  %s12 = scalar_select 0, %s11, %s9
  $region1: #{tpu_custom_call.1} parent=0
    #allocation5 [shape = 'u8[512]{0}', space=vmem, size = 0x400, scoped, tag = 'output window, operand 0, single buffered']
    #allocation6 [shape = 's32[2]{0}', space=sflag, size = 0x8, scoped, tag = 'scoped memory for tpu_custom_call.1']
    #allocation7 [shape = 'u8[1024]{0}', space=vmem, size = 0x400, scoped, tag = 'output window, operand 1']
    #allocation8 [shape = 's32[2]{0}', space=sflag, size = 0x8, scoped, tag = 'scoped memory for tpu_custom_call.1']
    %13 = vsyncpa [#allocation6], 0
    %14 = vsyncpa [#allocation8], 0
    %s15 = scalar_lea.sflag [#allocation8], 1
    %16 = vsyncpa %s15, 0
    loop: start=0, step=1, limit=5
    $region2: #{tpu_custom_call.1} parent=1 // loop_pre_header
      _
    $region3: #{tpu_custom_call.1} parent=1 // loop_header
      %s18 = sphi 0, %s22
      %p19 = scmp.ge.s32.totalorder %s18, 5
      %s28 = sphi 0, %s30
      %s31 = sphi 0, %s28
      %s32 = sphi 0, %s31
      %s48 = sphi 0, %s32
      %s52 = sphi 0, %s52
      %s54 = sphi 0, %s52
      %s55 = sphi 0, %s54
      %s69 = sphi 0, %s55
      %s73 = sphi 0, %s73
      %s75 = sphi 0, %s73
      %s76 = sphi 0, %s75
      %s90 = sphi 0, %s76
      %s94 = sphi 0, %s94
      %s96 = sphi 0, %s94
      %s97 = sphi 0, %s96
      %s111 = sphi 0, %s97
      %s115 = sphi 0, %s115
      %s117 = sphi 0, %s115
      %s118 = sphi 0, %s117
      %s132 = sphi 0, %s118
      %s136 = sphi 0, %s136
      %s138 = sphi 0, %s136
      %s139 = sphi 0, %s138
      %s153 = sphi 0, %s139
      %s157 = sphi 0, %s157
      %s159 = sphi 0, %s157
      %s160 = sphi 0, %s159
      %s174 = sphi 0, %s160
      %s180 = sphi 0, %s182
      %s183 = sphi 0, %s180
      %s184 = sphi 0, %s183
      %s200 = sphi 0, %s184
    $region4: #{tpu_custom_call.1} parent=1 // loop_header_branch
      %21 = sbr.rel (%p19) target = $region8
    $region5: #{tpu_custom_call.1} parent=1 // loop_body
      %s23 = ssub.s32 %s18, 1
      %s24 = ssub.s32 %s18, 2
      %s25 = sadd.s32 %s18, 1
      %s26 = ssub.s32 %s18, %s25
      %p27 = scmp.eq.s32.totalorder %s26, 0
      %s29 = sadd.s32 %s28, 1
      %s30 = scalar_select %p27, %s28, %s29
      %p33 = pneg %p27
      %p34 = scmp.eq.s32.totalorder %s18, 2
      %p35 = por %p33, %p34
      %p36 = scmp.ne.s32.totalorder %s28, %s31
      %p37 = scmp.eq.s32.totalorder %s18, 0
      %p38 = por %p36, %p37
      %p39 = scmp.ne.s32.totalorder %s28, %s31
      %p40 = scmp.eq.s32.totalorder %s23, 2
      %p41 = por %p39, %p40
      %p42 = scmp.ne.s32.totalorder %s31, %s32
      %p43 = scmp.eq.s32.totalorder %s23, 0
      %p44 = por %p42, %p43
      %p45 = scmp.ne.s32.totalorder %s31, %s32
      %p46 = scmp.eq.s32.totalorder %s24, 2
      %p47 = por %p45, %p46
      %p49 = scmp.ne.s32.totalorder %s32, %s48
      %p50 = scmp.eq.s32.totalorder %s24, 0
      %p51 = por %p49, %p50
      %s53 = sadd.s32 %s52, 1
      %p56 = scmp.eq.s32.totalorder %s18, 2
      %p57 = scmp.ne.s32.totalorder %s52, %s54
      %p58 = scmp.eq.s32.totalorder %s18, 0
      %p59 = por %p57, %p58
      %p60 = scmp.ne.s32.totalorder %s52, %s54
      %p61 = scmp.eq.s32.totalorder %s23, 2
      %p62 = por %p60, %p61
      %p63 = scmp.ne.s32.totalorder %s54, %s55
      %p64 = scmp.eq.s32.totalorder %s23, 0
      %p65 = por %p63, %p64
      %p66 = scmp.ne.s32.totalorder %s54, %s55
      %p67 = scmp.eq.s32.totalorder %s24, 2
      %p68 = por %p66, %p67
      %p70 = scmp.ne.s32.totalorder %s55, %s69
      %p71 = scmp.eq.s32.totalorder %s24, 0
      %p72 = por %p70, %p71
      %s74 = sadd.s32 %s73, 1
      %p77 = scmp.eq.s32.totalorder %s18, 2
      %p78 = scmp.ne.s32.totalorder %s73, %s75
      %p79 = scmp.eq.s32.totalorder %s18, 0
      %p80 = por %p78, %p79
      %p81 = scmp.ne.s32.totalorder %s73, %s75
      %p82 = scmp.eq.s32.totalorder %s23, 2
      %p83 = por %p81, %p82
      %p84 = scmp.ne.s32.totalorder %s75, %s76
      %p85 = scmp.eq.s32.totalorder %s23, 0
      %p86 = por %p84, %p85
      %p87 = scmp.ne.s32.totalorder %s75, %s76
      %p88 = scmp.eq.s32.totalorder %s24, 2
      %p89 = por %p87, %p88
      %p91 = scmp.ne.s32.totalorder %s76, %s90
      %p92 = scmp.eq.s32.totalorder %s24, 0
      %p93 = por %p91, %p92
      %s95 = sadd.s32 %s94, 1
      %p98 = scmp.eq.s32.totalorder %s18, 2
      %p99 = scmp.ne.s32.totalorder %s94, %s96
      %p100 = scmp.eq.s32.totalorder %s18, 0
      %p101 = por %p99, %p100
      %p102 = scmp.ne.s32.totalorder %s94, %s96
      %p103 = scmp.eq.s32.totalorder %s23, 2
      %p104 = por %p102, %p103
      %p105 = scmp.ne.s32.totalorder %s96, %s97
      %p106 = scmp.eq.s32.totalorder %s23, 0
      %p107 = por %p105, %p106
      %p108 = scmp.ne.s32.totalorder %s96, %s97
      %p109 = scmp.eq.s32.totalorder %s24, 2
      %p110 = por %p108, %p109
      %p112 = scmp.ne.s32.totalorder %s97, %s111
      %p113 = scmp.eq.s32.totalorder %s24, 0
      %p114 = por %p112, %p113
      %s116 = sadd.s32 %s115, 1
      %p119 = scmp.eq.s32.totalorder %s18, 2
      %p120 = scmp.ne.s32.totalorder %s115, %s117
      %p121 = scmp.eq.s32.totalorder %s18, 0
      %p122 = por %p120, %p121
      %p123 = scmp.ne.s32.totalorder %s115, %s117
      %p124 = scmp.eq.s32.totalorder %s23, 2
      %p125 = por %p123, %p124
      %p126 = scmp.ne.s32.totalorder %s117, %s118
      %p127 = scmp.eq.s32.totalorder %s23, 0
      %p128 = por %p126, %p127
      %p129 = scmp.ne.s32.totalorder %s117, %s118
      %p130 = scmp.eq.s32.totalorder %s24, 2
      %p131 = por %p129, %p130
      %p133 = scmp.ne.s32.totalorder %s118, %s132
      %p134 = scmp.eq.s32.totalorder %s24, 0
      %p135 = por %p133, %p134
      %s137 = sadd.s32 %s136, 1
      %p140 = scmp.eq.s32.totalorder %s18, 2
      %p141 = scmp.ne.s32.totalorder %s136, %s138
      %p142 = scmp.eq.s32.totalorder %s18, 0
      %p143 = por %p141, %p142
      %p144 = scmp.ne.s32.totalorder %s136, %s138
      %p145 = scmp.eq.s32.totalorder %s23, 2
      %p146 = por %p144, %p145
      %p147 = scmp.ne.s32.totalorder %s138, %s139
      %p148 = scmp.eq.s32.totalorder %s23, 0
      %p149 = por %p147, %p148
      %p150 = scmp.ne.s32.totalorder %s138, %s139
      %p151 = scmp.eq.s32.totalorder %s24, 2
      %p152 = por %p150, %p151
      %p154 = scmp.ne.s32.totalorder %s139, %s153
      %p155 = scmp.eq.s32.totalorder %s24, 0
      %p156 = por %p154, %p155
      %s158 = sadd.s32 %s157, 1
      %p161 = scmp.eq.s32.totalorder %s18, 2
      %p162 = scmp.ne.s32.totalorder %s157, %s159
      %p163 = scmp.eq.s32.totalorder %s18, 0
      %p164 = por %p162, %p163
      %p165 = scmp.ne.s32.totalorder %s157, %s159
      %p166 = scmp.eq.s32.totalorder %s23, 2
      %p167 = por %p165, %p166
      %p168 = scmp.ne.s32.totalorder %s159, %s160
      %p169 = scmp.eq.s32.totalorder %s23, 0
      %p170 = por %p168, %p169
      %p171 = scmp.ne.s32.totalorder %s159, %s160
      %p172 = scmp.eq.s32.totalorder %s24, 2
      %p173 = por %p171, %p172
      %p175 = scmp.ne.s32.totalorder %s160, %s174
      %p176 = scmp.eq.s32.totalorder %s24, 0
      %p177 = por %p175, %p176
      %s178 = ssub.s32 %s18, %s25
      %p179 = scmp.eq.s32.totalorder %s178, 0
      %s181 = sadd.s32 %s180, 1
      %s182 = scalar_select %p179, %s180, %s181
      %p185 = pneg %p179
      %p186 = scmp.eq.s32.totalorder %s18, 2
      %p187 = por %p185, %p186
      %p188 = scmp.ne.s32.totalorder %s180, %s183
      %p189 = scmp.eq.s32.totalorder %s18, 0
      %p190 = por %p188, %p189
      %p191 = scmp.ne.s32.totalorder %s180, %s183
      %p192 = scmp.eq.s32.totalorder %s23, 2
      %p193 = por %p191, %p192
      %p194 = scmp.ne.s32.totalorder %s183, %s184
      %p195 = scmp.eq.s32.totalorder %s23, 0
      %p196 = por %p194, %p195
      %p197 = scmp.ne.s32.totalorder %s183, %s184
      %p198 = scmp.eq.s32.totalorder %s24, 2
      %p199 = por %p197, %p198
      %p201 = scmp.ne.s32.totalorder %s184, %s200
      %p202 = scmp.eq.s32.totalorder %s24, 0
      %p203 = por %p201, %p202
      %p204 = scmp.le.s32.totalorder 1, %s18
      %p205 = scmp.lt.s32.totalorder %s18, 4
      %p206 = pnand %p204, %p205
      %p207 = pneg %p206
      // Predicated region
      $region9: #{tpu_custom_call.1} parent=5 // pred_check
        _
      $region10: #{tpu_custom_call.1} parent=5 // pred_check_branch
        %209 = sbr.rel (%p206) target = $region12
      $region11: #{tpu_custom_call.1} parent=5 // pred_region
        %s210 = ssub.s32 %s18, 1
        // Predicated region
        $region13: #{tpu_custom_call.1} parent=11 // pred_check
          %p211 = pneg %p65
        $region14: #{tpu_custom_call.1} parent=11 // pred_check_branch
          %213 = sbr.rel (%p211) target = $region16
        $region15: #{tpu_custom_call.1} parent=11 // pred_region
          _
        $region16: #{tpu_custom_call.1} parent=11 // pred_fallthru
          _
        // Predicated region
        $region17: #{tpu_custom_call.1} parent=11 // pred_check
          %p214 = pneg %p86
        $region18: #{tpu_custom_call.1} parent=11 // pred_check_branch
          %216 = sbr.rel (%p214) target = $region20
        $region19: #{tpu_custom_call.1} parent=11 // pred_region
          _
        $region20: #{tpu_custom_call.1} parent=11 // pred_fallthru
          _
        // Predicated region
        $region21: #{tpu_custom_call.1} parent=11 // pred_check
          %p217 = pneg %p107
        $region22: #{tpu_custom_call.1} parent=11 // pred_check_branch
          %219 = sbr.rel (%p217) target = $region24
        $region23: #{tpu_custom_call.1} parent=11 // pred_region
          _
        $region24: #{tpu_custom_call.1} parent=11 // pred_fallthru
          _
        // Predicated region
        $region25: #{tpu_custom_call.1} parent=11 // pred_check
          %p220 = pneg %p128
        $region26: #{tpu_custom_call.1} parent=11 // pred_check_branch
          %222 = sbr.rel (%p220) target = $region28
        $region27: #{tpu_custom_call.1} parent=11 // pred_region
          _
        $region28: #{tpu_custom_call.1} parent=11 // pred_fallthru
          _
        // Predicated region
        $region29: #{tpu_custom_call.1} parent=11 // pred_check
          %p223 = pneg %p149
        $region30: #{tpu_custom_call.1} parent=11 // pred_check_branch
          %225 = sbr.rel (%p223) target = $region32
        $region31: #{tpu_custom_call.1} parent=11 // pred_region
          _
        $region32: #{tpu_custom_call.1} parent=11 // pred_fallthru
          _
      $region12: #{tpu_custom_call.1} parent=5 // pred_fallthru
        _
      %p226 = scmp.lt.s32.totalorder %s18, 3
      // Predicated region
      $region33: #{tpu_custom_call.1} parent=5 // pred_check
        %p227 = pneg %p226
      $region34: #{tpu_custom_call.1} parent=5 // pred_check_branch
        %229 = sbr.rel (%p227) target = $region36
      $region35: #{tpu_custom_call.1} parent=5 // pred_region
        // Predicated region
        $region37: #{tpu_custom_call.1} parent=35 // pred_check
          %p230 = pneg %p38
        $region38: #{tpu_custom_call.1} parent=35 // pred_check_branch
          %232 = sbr.rel (%p230) target = $region40
        $region39: #{tpu_custom_call.1} parent=35 // pred_region
          %s233 = smul.u32 16, %s18
          %p234 = scmp.lt.s32.totalorder %s233, 47
          %s235 = scalar_select %p234, %s233, 47
          %s236 = smul.addr %s235, 8
          %s237 = scalar_lea.vmem %s0, %s236
          %s238 = smul.u32 16, %s18
        $region40: #{tpu_custom_call.1} parent=35 // pred_fallthru
          _
      $region36: #{tpu_custom_call.1} parent=5 // pred_fallthru
        _
      %p239 = scmp.le.s32.totalorder 1, %s18
      %p240 = scmp.lt.s32.totalorder %s18, 4
      %p241 = pnand %p239, %p240
      %p242 = pneg %p241
      // Predicated region
      $region41: #{tpu_custom_call.1} parent=5 // pred_check
        _
      $region42: #{tpu_custom_call.1} parent=5 // pred_check_branch
        %244 = sbr.rel (%p241) target = $region44
      $region43: #{tpu_custom_call.1} parent=5 // pred_region
        %s245 = ssub.s32 %s18, 1
        %s246 = smul.u32 16, %s23
        %p247 = scmp.lt.s32.totalorder %s246, 47
        %s248 = scalar_select %p247, %s246, 47
        %s249 = smul.addr %s248, 8
        %s250 = scalar_lea.vmem %s0, %s249
        %p251 = pneg %p44
        %p252 = pneg %p41
        %p253 = pneg %p65
        %p254 = pneg %p62
        %p255 = pneg %p86
        %p256 = pneg %p83
        %p257 = pneg %p107
        %p258 = pneg %p104
        %p259 = pneg %p128
        %p260 = pneg %p125
        %p261 = pneg %p149
        %p262 = pneg %p146
        %p263 = pneg %p170
        %p264 = pneg %p167
        %p265 = pneg %p196
        %p266 = pneg %p193
        %s267 = sand.u32 %s183, 1
        %s268 = scalar_lea.sflag [#allocation8], %s267
        %s269 = sand.u32 %s183, 1
        %s270 = scalar_lea.vmem [#allocation7], %s269
        %s271 = smul.u32 16, %s23
        %p272 = scmp.lt.s32.totalorder %s271, 47
        %s273 = scalar_select %p272, %s271, 47
        %s274 = smul.addr %s273, 8
        %s275 = scalar_lea.vmem %s0, %s274
        %s276 = smul.u32 16, %s23
        %p277 = scmp.eq.s32.totalorder %s23, 0
        // Predicated region
        $region45: #{tpu_custom_call.1} parent=43 // pred_check
          %p278 = pneg %p277
        $region46: #{tpu_custom_call.1} parent=43 // pred_check_branch
          %280 = sbr.rel (%p278) target = $region48
        $region47: #{tpu_custom_call.1} parent=43 // pred_region
          %vm281 = vcmask 0
          %282 = vst.msk [vmem:[#allocation2] sm:$0x1] %vm281, -1e+30
          %283 = vst.msk [vmem:[#allocation3] sm:$0x1] %vm281, 0.0
          %284 = vst [vmem:[#allocation4] sm:$0x1] 0.0
        $region48: #{tpu_custom_call.1} parent=43 // pred_fallthru
          _
        %v285 = vld [vmem:[%s275] sm:$0xff]
        %v286 = vld [vmem:[%s275 + $0x8] sm:$0xff]
        %v287 = vld [vmem:[%s275 + $0x10] sm:$0xff]
        %v288 = vld [vmem:[%s275 + $0x18] sm:$0xff]
        %v289 = vld [vmem:[%s275 + $0x20] sm:$0xff]
        %v290 = vld [vmem:[%s275 + $0x28] sm:$0xff]
        %v291 = vld [vmem:[%s275 + $0x30] sm:$0xff]
        %v292 = vld [vmem:[%s275 + $0x38] sm:$0xff]
        %v293 = vld [vmem:[%s275 + $0x40] sm:$0xff]
        %v294 = vld [vmem:[%s275 + $0x48] sm:$0xff]
        %v295 = vld [vmem:[%s275 + $0x50] sm:$0xff]
        %v296 = vld [vmem:[%s275 + $0x58] sm:$0xff]
        %v297 = vld [vmem:[%s275 + $0x60] sm:$0xff]
        %v298 = vld [vmem:[%s275 + $0x68] sm:$0xff]
        %v299 = vld [vmem:[%s275 + $0x70] sm:$0xff]
        %v300 = vld [vmem:[%s275 + $0x78] sm:$0xff]
        %v301 = vld [vmem:[%s1] sm:$0xff]
        %v302 = vld [vmem:[%s1 + $0x8] sm:$0xff]
        %v303 = vld [vmem:[%s1 + $0x10] sm:$0xff]
        %v304 = vld [vmem:[%s1 + $0x18] sm:$0xff]
        %v305 = vld [vmem:[%s2] sm:$0x1]
        %v307 = vlaneseq
        %v308 = vshrl.u32 %v307, 7
        %v309 = vsub.s32 0, %v308
        %v310 = vrot.slane %v305, %v309
        %vm312 = vcmask 261120
        %v314 = vsel %vm312, %v285, 0
        %v317 = vsel %vm312, %v286, 0
        %v320 = vsel %vm312, %v287, 0
        %v323 = vsel %vm312, %v288, 0
        %v326 = vsel %vm312, %v289, 0
        %v329 = vsel %vm312, %v290, 0
        %v332 = vsel %vm312, %v291, 0
        %v335 = vsel %vm312, %v292, 0
        %v338 = vsel %vm312, %v293, 0
        %v341 = vsel %vm312, %v294, 0
        %v344 = vsel %vm312, %v295, 0
        %v347 = vsel %vm312, %v296, 0
        %v350 = vsel %vm312, %v297, 0
        %v353 = vsel %vm312, %v298, 0
        %v356 = vsel %vm312, %v299, 0
        %v359 = vsel %vm312, %v300, 0
        %361 = vmatprep.subr.mxu0 0.0
        %362 = vmatpush1.msra.mxu0 %v301
        %363 = vmatprep.subr.mxu0 0.0
        %364 = vmatpush1.msra.mxu0 %v302
        %365 = vmatprep.subr.mxu0 0.0
        %366 = vmatpush1.msra.mxu0 %v303
        %367 = vmatprep.subr.mxu0 0.0
        %368 = vmatpush1.msra.mxu0 %v304
        %369 = vmatprep.subr.mxu0 0.0
        %370 = vmatpush1.msra.mxu0 0.0
        %371 = vmatprep.subr.mxu0 0.0
        %372 = vmatpush1.msra.mxu0 0.0
        %373 = vmatprep.subr.mxu0 0.0
        %374 = vmatpush1.msra.mxu0 0.0
        %375 = vmatprep.subr.mxu0 0.0
        %376 = vmatpush1.msra.mxu0 0.0
        %377 = vmatprep.subr.mxu0 0.0
        %378 = vmatpush1.msra.mxu0 0.0
        %379 = vmatprep.subr.mxu0 0.0
        %380 = vmatpush1.msra.mxu0 0.0
        %381 = vmatprep.subr.mxu0 0.0
        %382 = vmatpush1.msra.mxu0 0.0
        %383 = vmatprep.subr.mxu0 0.0
        %384 = vmatpush1.msra.mxu0 0.0
        %385 = vmatprep.subr.mxu0 0.0
        %386 = vmatpush1.msra.mxu0 0.0
        %387 = vmatprep.subr.mxu0 0.0
        %388 = vmatpush1.msra.mxu0 0.0
        %389 = vmatprep.subr.mxu0 0.0
        %390 = vmatpush1.msra.mxu0 0.0
        %391 = vmatprep.subr.mxu0 0.0
        %392 = vmatpush1.msra.mxu0 0.0
        %393 = vmatprep.subr.mxu0 0.0
        %394 = vmatpush1.msra.mxu0 0.0
        %395 = vmatprep.subr.mxu0 0.0
        %396 = vmatpush1.msra.mxu0 0.0
        %397 = vmatprep.subr.mxu0 0.0
        %398 = vmatpush1.msra.mxu0 0.0
        %399 = vmatprep.subr.mxu0 0.0
        %400 = vmatpush1.msra.mxu0 0.0
        %401 = vmatprep.subr.mxu0 0.0
        %402 = vmatpush1.msra.mxu0 0.0
        %403 = vmatprep.subr.mxu0 0.0
        %404 = vmatpush1.msra.mxu0 0.0
        %405 = vmatprep.subr.mxu0 0.0
        %406 = vmatpush1.msra.mxu0 0.0
        %407 = vmatprep.subr.mxu0 0.0
        %408 = vmatpush1.msra.mxu0 0.0
        %409 = vmatprep.subr.mxu0 0.0
        %410 = vmatpush1.msra.mxu0 0.0
        %411 = vmatprep.subr.mxu0 0.0
        %412 = vmatpush1.msra.mxu0 0.0
        %413 = vmatprep.subr.mxu0 0.0
        %414 = vmatpush1.msra.mxu0 0.0
        %415 = vmatprep.subr.mxu0 0.0
        %416 = vmatpush1.msra.mxu0 0.0
        %417 = vmatprep.subr.mxu0 0.0
        %418 = vmatpush1.msra.mxu0 0.0
        %419 = vmatprep.subr.mxu0 0.0
        %420 = vmatpush1.msra.mxu0 0.0
        %421 = vmatprep.subr.mxu0 0.0
        %422 = vmatpush1.msra.mxu0 0.0
        %423 = vmatprep.subr.mxu0 0.0
        %424 = vmatpush1.msra.mxu0 0.0
        %425 = vmatprep.mubr.f32.mxu0 0.0
        %426 = vmatmul.mubr.f32.gmra.mrb[0].mxu0 %v314
        %v427 = vpop.f32.mrb[0].mxu0
        %v428 = vadd.f32 %v310, %v427
        %v429 = vpop.f32.mrb[0].mxu0
        %430 = vmatprep.mubr.f32.mxu0 0.0
        %431 = vmatmul.mubr.f32.gmra.mrb[0].mxu0 %v317
        %v432 = vpop.f32.mrb[0].mxu0
        %v433 = vadd.f32 %v310, %v432
        %v434 = vpop.f32.mrb[0].mxu0
        %435 = vmatprep.mubr.f32.mxu0 0.0
        %436 = vmatmul.mubr.f32.gmra.mrb[0].mxu0 %v320
        %v437 = vpop.f32.mrb[0].mxu0
        %v438 = vadd.f32 %v310, %v437
        %v439 = vpop.f32.mrb[0].mxu0
        %440 = vmatprep.mubr.f32.mxu0 0.0
        %441 = vmatmul.mubr.f32.gmra.mrb[0].mxu0 %v323
        %v442 = vpop.f32.mrb[0].mxu0
        %v443 = vadd.f32 %v310, %v442
        %v444 = vpop.f32.mrb[0].mxu0
        %445 = vmatprep.mubr.f32.mxu0 0.0
        %446 = vmatmul.mubr.f32.gmra.mrb[0].mxu0 %v326
        %v447 = vpop.f32.mrb[0].mxu0
        %v448 = vadd.f32 %v310, %v447
        %v449 = vpop.f32.mrb[0].mxu0
        %450 = vmatprep.mubr.f32.mxu0 0.0
        %451 = vmatmul.mubr.f32.gmra.mrb[0].mxu0 %v329
        %v452 = vpop.f32.mrb[0].mxu0
        %v453 = vadd.f32 %v310, %v452
        %v454 = vpop.f32.mrb[0].mxu0
        %455 = vmatprep.mubr.f32.mxu0 0.0
        %456 = vmatmul.mubr.f32.gmra.mrb[0].mxu0 %v332
        %v457 = vpop.f32.mrb[0].mxu0
        %v458 = vadd.f32 %v310, %v457
        %v459 = vpop.f32.mrb[0].mxu0
        %460 = vmatprep.mubr.f32.mxu0 0.0
        %461 = vmatmul.mubr.f32.gmra.mrb[0].mxu0 %v335
        %v462 = vpop.f32.mrb[0].mxu0
        %v463 = vadd.f32 %v310, %v462
        %v464 = vpop.f32.mrb[0].mxu0
        %465 = vmatprep.mubr.f32.mxu0 0.0
        %466 = vmatmul.mubr.f32.gmra.mrb[0].mxu0 %v338
        %v467 = vpop.f32.mrb[0].mxu0
        %v468 = vadd.f32 %v310, %v467
        %v469 = vpop.f32.mrb[0].mxu0
        %470 = vmatprep.mubr.f32.mxu0 0.0
        %471 = vmatmul.mubr.f32.gmra.mrb[0].mxu0 %v341
        %v472 = vpop.f32.mrb[0].mxu0
        %v473 = vadd.f32 %v310, %v472
        %v474 = vpop.f32.mrb[0].mxu0
        %475 = vmatprep.mubr.f32.mxu0 0.0
        %476 = vmatmul.mubr.f32.gmra.mrb[0].mxu0 %v344
        %v477 = vpop.f32.mrb[0].mxu0
        %v478 = vadd.f32 %v310, %v477
        %v479 = vpop.f32.mrb[0].mxu0
        %480 = vmatprep.mubr.f32.mxu0 0.0
        %481 = vmatmul.mubr.f32.gmra.mrb[0].mxu0 %v347
        %v482 = vpop.f32.mrb[0].mxu0
        %v483 = vadd.f32 %v310, %v482
        %v484 = vpop.f32.mrb[0].mxu0
        %485 = vmatprep.mubr.f32.mxu0 0.0
        %486 = vmatmul.mubr.f32.gmra.mrb[0].mxu0 %v350
        %v487 = vpop.f32.mrb[0].mxu0
        %v488 = vadd.f32 %v310, %v487
        %v489 = vpop.f32.mrb[0].mxu0
        %490 = vmatprep.mubr.f32.mxu0 0.0
        %491 = vmatmul.mubr.f32.gmra.mrb[0].mxu0 %v353
        %v492 = vpop.f32.mrb[0].mxu0
        %v493 = vadd.f32 %v310, %v492
        %v494 = vpop.f32.mrb[0].mxu0
        %495 = vmatprep.mubr.f32.mxu0 0.0
        %496 = vmatmul.mubr.f32.gmra.mrb[0].mxu0 %v356
        %v497 = vpop.f32.mrb[0].mxu0
        %v498 = vadd.f32 %v310, %v497
        %v499 = vpop.f32.mrb[0].mxu0
        %500 = vmatprep.mubr.f32.mxu0 0.0
        %501 = vmatmul.mubr.f32.gmra.mrb[0].mxu0 %v359
        %v502 = vpop.f32.mrb[0].mxu0
        %v503 = vadd.f32 %v310, %v502
        %v504 = vpop.f32.mrb[0].mxu0
        %505 = vdwg.mxu0
        %v506 = vmax.f32 %v428, 0.0
        %v507 = vmax.f32 %v433, 0.0
        %v508 = vmax.f32 %v438, 0.0
        %v509 = vmax.f32 %v443, 0.0
        %v510 = vmax.f32 %v448, 0.0
        %v511 = vmax.f32 %v453, 0.0
        %v512 = vmax.f32 %v458, 0.0
        %v513 = vmax.f32 %v463, 0.0
        %v514 = vmax.f32 %v468, 0.0
        %v515 = vmax.f32 %v473, 0.0
        %v516 = vmax.f32 %v478, 0.0
        %v517 = vmax.f32 %v483, 0.0
        %v518 = vmax.f32 %v488, 0.0
        %v519 = vmax.f32 %v493, 0.0
        %v520 = vmax.f32 %v498, 0.0
        %v521 = vmax.f32 %v503, 0.0
        %v522 = vld [vmem:[%s3] sm:$0xff]
        %v523 = vld [vmem:[%s3 + $0x8] sm:$0xff]
        %v524 = vld [vmem:[%s3 + $0x10] sm:$0xff]
        %v525 = vld [vmem:[%s3 + $0x18] sm:$0xff]
        %v526 = vld [vmem:[%s3 + $0x20] sm:$0xff]
        %v527 = vld [vmem:[%s3 + $0x28] sm:$0xff]
        %v528 = vld [vmem:[%s3 + $0x30] sm:$0xff]
        %v529 = vld [vmem:[%s3 + $0x38] sm:$0xff]
        %v530 = vld [vmem:[%s3 + $0x40] sm:$0xff]
        %v531 = vld [vmem:[%s3 + $0x48] sm:$0xff]
        %v532 = vld [vmem:[%s3 + $0x50] sm:$0xff]
        %v533 = vld [vmem:[%s3 + $0x58] sm:$0xff]
        %v534 = vld [vmem:[%s3 + $0x60] sm:$0xff]
        %v535 = vld [vmem:[%s3 + $0x68] sm:$0xff]
        %v536 = vld [vmem:[%s3 + $0x70] sm:$0xff]
        %v537 = vld [vmem:[%s3 + $0x78] sm:$0xff]
        %v538 = vld [vmem:[%s4] sm:$0x1]
        %v540 = vlaneseq
        %v541 = vshrl.u32 %v540, 7
        %v542 = vsub.s32 0, %v541
        %v543 = vrot.slane %v538, %v542
        %545 = vmatprep.subr.mxu0 0.0
        %546 = vmatpush1.msra.mxu0 %v522
        %547 = vmatprep.subr.mxu0 0.0
        %548 = vmatpush1.msra.mxu0 %v523
        %549 = vmatprep.subr.mxu0 0.0
        %550 = vmatpush1.msra.mxu0 %v524
        %551 = vmatprep.subr.mxu0 0.0
        %552 = vmatpush1.msra.mxu0 %v525
        %553 = vmatprep.subr.mxu0 0.0
        %554 = vmatpush1.msra.mxu0 %v526
        %555 = vmatprep.subr.mxu0 0.0
        %556 = vmatpush1.msra.mxu0 %v527
        %557 = vmatprep.subr.mxu0 0.0
        %558 = vmatpush1.msra.mxu0 %v528
        %559 = vmatprep.subr.mxu0 0.0
        %560 = vmatpush1.msra.mxu0 %v529
        %561 = vmatprep.subr.mxu0 0.0
        %562 = vmatpush1.msra.mxu0 %v530
        %563 = vmatprep.subr.mxu0 0.0
        %564 = vmatpush1.msra.mxu0 %v531
        %565 = vmatprep.subr.mxu0 0.0
        %566 = vmatpush1.msra.mxu0 %v532
        %567 = vmatprep.subr.mxu0 0.0
        %568 = vmatpush1.msra.mxu0 %v533
        %569 = vmatprep.subr.mxu0 0.0
        %570 = vmatpush1.msra.mxu0 %v534
        %571 = vmatprep.subr.mxu0 0.0
        %572 = vmatpush1.msra.mxu0 %v535
        %573 = vmatprep.subr.mxu0 0.0
        %574 = vmatpush1.msra.mxu0 %v536
        %575 = vmatprep.subr.mxu0 0.0
        %576 = vmatpush1.msra.mxu0 %v537
        %577 = vmatprep.subr.mxu0 0.0
        %578 = vmatpush1.msra.mxu0 0.0
        %579 = vmatprep.subr.mxu0 0.0
        %580 = vmatpush1.msra.mxu0 0.0
        %581 = vmatprep.subr.mxu0 0.0
        %582 = vmatpush1.msra.mxu0 0.0
        %583 = vmatprep.subr.mxu0 0.0
        %584 = vmatpush1.msra.mxu0 0.0
        %585 = vmatprep.subr.mxu0 0.0
        %586 = vmatpush1.msra.mxu0 0.0
        %587 = vmatprep.subr.mxu0 0.0
        %588 = vmatpush1.msra.mxu0 0.0
        %589 = vmatprep.subr.mxu0 0.0
        %590 = vmatpush1.msra.mxu0 0.0
        %591 = vmatprep.subr.mxu0 0.0
        %592 = vmatpush1.msra.mxu0 0.0
        %593 = vmatprep.subr.mxu0 0.0
        %594 = vmatpush1.msra.mxu0 0.0
        %595 = vmatprep.subr.mxu0 0.0
        %596 = vmatpush1.msra.mxu0 0.0
        %597 = vmatprep.subr.mxu0 0.0
        %598 = vmatpush1.msra.mxu0 0.0
        %599 = vmatprep.subr.mxu0 0.0
        %600 = vmatpush1.msra.mxu0 0.0
        %601 = vmatprep.subr.mxu0 0.0
        %602 = vmatpush1.msra.mxu0 0.0
        %603 = vmatprep.subr.mxu0 0.0
        %604 = vmatpush1.msra.mxu0 0.0
        %605 = vmatprep.subr.mxu0 0.0
        %606 = vmatpush1.msra.mxu0 0.0
        %607 = vmatprep.subr.mxu0 0.0
        %608 = vmatpush1.msra.mxu0 0.0
        %609 = vmatprep.mubr.f32.mxu0 0.0
        %610 = vmatmul.mubr.f32.gmra.mrb[0].mxu0 %v506
        %v611 = vpop.f32.mrb[0].mxu0
        %v612 = vadd.f32 %v543, %v611
        %v613 = vpop.f32.mrb[0].mxu0
        %614 = vmatprep.mubr.f32.mxu0 0.0
        %615 = vmatmul.mubr.f32.gmra.mrb[0].mxu0 %v507
        %v616 = vpop.f32.mrb[0].mxu0
        %v617 = vadd.f32 %v543, %v616
        %v618 = vpop.f32.mrb[0].mxu0
        %619 = vmatprep.mubr.f32.mxu0 0.0
        %620 = vmatmul.mubr.f32.gmra.mrb[0].mxu0 %v508
        %v621 = vpop.f32.mrb[0].mxu0
        %v622 = vadd.f32 %v543, %v621
        %v623 = vpop.f32.mrb[0].mxu0
        %624 = vmatprep.mubr.f32.mxu0 0.0
        %625 = vmatmul.mubr.f32.gmra.mrb[0].mxu0 %v509
        %v626 = vpop.f32.mrb[0].mxu0
        %v627 = vadd.f32 %v543, %v626
        %v628 = vpop.f32.mrb[0].mxu0
        %629 = vmatprep.mubr.f32.mxu0 0.0
        %630 = vmatmul.mubr.f32.gmra.mrb[0].mxu0 %v510
        %v631 = vpop.f32.mrb[0].mxu0
        %v632 = vadd.f32 %v543, %v631
        %v633 = vpop.f32.mrb[0].mxu0
        %634 = vmatprep.mubr.f32.mxu0 0.0
        %635 = vmatmul.mubr.f32.gmra.mrb[0].mxu0 %v511
        %v636 = vpop.f32.mrb[0].mxu0
        %v637 = vadd.f32 %v543, %v636
        %v638 = vpop.f32.mrb[0].mxu0
        %639 = vmatprep.mubr.f32.mxu0 0.0
        %640 = vmatmul.mubr.f32.gmra.mrb[0].mxu0 %v512
        %v641 = vpop.f32.mrb[0].mxu0
        %v642 = vadd.f32 %v543, %v641
        %v643 = vpop.f32.mrb[0].mxu0
        %644 = vmatprep.mubr.f32.mxu0 0.0
        %645 = vmatmul.mubr.f32.gmra.mrb[0].mxu0 %v513
        %v646 = vpop.f32.mrb[0].mxu0
        %v647 = vadd.f32 %v543, %v646
        %v648 = vpop.f32.mrb[0].mxu0
        %649 = vmatprep.mubr.f32.mxu0 0.0
        %650 = vmatmul.mubr.f32.gmra.mrb[0].mxu0 %v514
        %v651 = vpop.f32.mrb[0].mxu0
        %v652 = vadd.f32 %v543, %v651
        %v653 = vpop.f32.mrb[0].mxu0
        %654 = vmatprep.mubr.f32.mxu0 0.0
        %655 = vmatmul.mubr.f32.gmra.mrb[0].mxu0 %v515
        %v656 = vpop.f32.mrb[0].mxu0
        %v657 = vadd.f32 %v543, %v656
        %v658 = vpop.f32.mrb[0].mxu0
        %659 = vmatprep.mubr.f32.mxu0 0.0
        %660 = vmatmul.mubr.f32.gmra.mrb[0].mxu0 %v516
        %v661 = vpop.f32.mrb[0].mxu0
        %v662 = vadd.f32 %v543, %v661
        %v663 = vpop.f32.mrb[0].mxu0
        %664 = vmatprep.mubr.f32.mxu0 0.0
        %665 = vmatmul.mubr.f32.gmra.mrb[0].mxu0 %v517
        %v666 = vpop.f32.mrb[0].mxu0
        %v667 = vadd.f32 %v543, %v666
        %v668 = vpop.f32.mrb[0].mxu0
        %669 = vmatprep.mubr.f32.mxu0 0.0
        %670 = vmatmul.mubr.f32.gmra.mrb[0].mxu0 %v518
        %v671 = vpop.f32.mrb[0].mxu0
        %v672 = vadd.f32 %v543, %v671
        %v673 = vpop.f32.mrb[0].mxu0
        %674 = vmatprep.mubr.f32.mxu0 0.0
        %675 = vmatmul.mubr.f32.gmra.mrb[0].mxu0 %v519
        %v676 = vpop.f32.mrb[0].mxu0
        %v677 = vadd.f32 %v543, %v676
        %v678 = vpop.f32.mrb[0].mxu0
        %679 = vmatprep.mubr.f32.mxu0 0.0
        %680 = vmatmul.mubr.f32.gmra.mrb[0].mxu0 %v520
        %v681 = vpop.f32.mrb[0].mxu0
        %v682 = vadd.f32 %v543, %v681
        %v683 = vpop.f32.mrb[0].mxu0
        %684 = vmatprep.mubr.f32.mxu0 0.0
        %685 = vmatmul.mubr.f32.gmra.mrb[0].mxu0 %v521
        %v686 = vpop.f32.mrb[0].mxu0
        %v687 = vadd.f32 %v543, %v686
        %v688 = vpop.f32.mrb[0].mxu0
        %689 = vdwg.mxu0
        %v690 = vtanh.pop %v612
        %v691 = vtanh.pop %v617
        %v692 = vtanh.pop %v622
        %v693 = vtanh.pop %v627
        %v694 = vtanh.pop %v632
        %v695 = vtanh.pop %v637
        %v696 = vtanh.pop %v642
        %v697 = vtanh.pop %v647
        %v698 = vtanh.pop %v652
        %v699 = vtanh.pop %v657
        %v700 = vtanh.pop %v662
        %v701 = vtanh.pop %v667
        %v702 = vtanh.pop %v672
        %v703 = vtanh.pop %v677
        %v704 = vtanh.pop %v682
        %v705 = vtanh.pop %v687
        %v706 = vld [vmem:[%s5] sm:$0x1]
        %v708 = vlaneseq
        %v709 = vshrl.u32 %v708, 7
        %v710 = vsub.s32 0, %v709
        %v711 = vrot.slane %v706, %v710
        %v713 = vmul.f32 %v690, %v711
        %v714 = vmul.f32 %v691, %v711
        %v715 = vmul.f32 %v692, %v711
        %v716 = vmul.f32 %v693, %v711
        %v717 = vmul.f32 %v694, %v711
        %v718 = vmul.f32 %v695, %v711
        %v719 = vmul.f32 %v696, %v711
        %v720 = vmul.f32 %v697, %v711
        %v721 = vmul.f32 %v698, %v711
        %v722 = vmul.f32 %v699, %v711
        %v723 = vmul.f32 %v700, %v711
        %v724 = vmul.f32 %v701, %v711
        %v725 = vmul.f32 %v702, %v711
        %v726 = vmul.f32 %v703, %v711
        %v727 = vmul.f32 %v704, %v711
        %v728 = vmul.f32 %v705, %v711
        %vm729 = vcmask 523264
        %v730 = vsel %vm729, %v713, 0.0
        %731 = vadd.xlane.f32.xlu0 %v730
        %v732 = vpop.xlane.xlu0 %731
        %v733 = vsel %vm729, %v714, 0.0
        %734 = vadd.xlane.f32.xlu0 %v733
        %v735 = vpop.xlane.xlu0 %734
        %v736 = vsel %vm729, %v715, 0.0
        %737 = vadd.xlane.f32.xlu0 %v736
        %v738 = vpop.xlane.xlu0 %737
        %v739 = vsel %vm729, %v716, 0.0
        %740 = vadd.xlane.f32.xlu0 %v739
        %v741 = vpop.xlane.xlu0 %740
        %v742 = vsel %vm729, %v717, 0.0
        %743 = vadd.xlane.f32.xlu0 %v742
        %v744 = vpop.xlane.xlu0 %743
        %v745 = vsel %vm729, %v718, 0.0
        %746 = vadd.xlane.f32.xlu0 %v745
        %v747 = vpop.xlane.xlu0 %746
        %v748 = vsel %vm729, %v719, 0.0
        %749 = vadd.xlane.f32.xlu0 %v748
        %v750 = vpop.xlane.xlu0 %749
        %v751 = vsel %vm729, %v720, 0.0
        %752 = vadd.xlane.f32.xlu0 %v751
        %v753 = vpop.xlane.xlu0 %752
        %v754 = vsel %vm729, %v721, 0.0
        %755 = vadd.xlane.f32.xlu0 %v754
        %v756 = vpop.xlane.xlu0 %755
        %v757 = vsel %vm729, %v722, 0.0
        %758 = vadd.xlane.f32.xlu0 %v757
        %v759 = vpop.xlane.xlu0 %758
        %v760 = vsel %vm729, %v723, 0.0
        %761 = vadd.xlane.f32.xlu0 %v760
        %v762 = vpop.xlane.xlu0 %761
        %v763 = vsel %vm729, %v724, 0.0
        %764 = vadd.xlane.f32.xlu0 %v763
        %v765 = vpop.xlane.xlu0 %764
        %v766 = vsel %vm729, %v725, 0.0
        %767 = vadd.xlane.f32.xlu0 %v766
        %v768 = vpop.xlane.xlu0 %767
        %v769 = vsel %vm729, %v726, 0.0
        %770 = vadd.xlane.f32.xlu0 %v769
        %v771 = vpop.xlane.xlu0 %770
        %v772 = vsel %vm729, %v727, 0.0
        %773 = vadd.xlane.f32.xlu0 %v772
        %v774 = vpop.xlane.xlu0 %773
        %v775 = vsel %vm729, %v728, 0.0
        %776 = vadd.xlane.f32.xlu0 %v775
        %v777 = vpop.xlane.xlu0 %776
        %778 = vxpose.xlu0.b32.start [1/16] %v732, 128
        %779 = vxpose.xlu0.b32.cont [2/16] %v735, 128
        %780 = vxpose.xlu0.b32.cont [3/16] %v738, 128
        %781 = vxpose.xlu0.b32.cont [4/16] %v741, 128
        %782 = vxpose.xlu0.b32.cont [5/16] %v744, 128
        %783 = vxpose.xlu0.b32.cont [6/16] %v747, 128
        %784 = vxpose.xlu0.b32.cont [7/16] %v750, 128
        %785 = vxpose.xlu0.b32.cont [8/16] %v753, 128
        %786 = vxpose.xlu0.b32.cont [9/16] %v756, 128
        %787 = vxpose.xlu0.b32.cont [10/16] %v759, 128
        %788 = vxpose.xlu0.b32.cont [11/16] %v762, 128
        %789 = vxpose.xlu0.b32.cont [12/16] %v765, 128
        %790 = vxpose.xlu0.b32.cont [13/16] %v768, 128
        %791 = vxpose.xlu0.b32.cont [14/16] %v771, 128
        %792 = vxpose.xlu0.b32.cont [15/16] %v774, 128
        %793 = vxpose.xlu0.b32.end [16/16] %v777, 128
        %v794 = vpop.trf.xlu0
        %v795 = vpop.trf.xlu0
        %v796 = vpop.trf.xlu0
        %v797 = vpop.trf.xlu0
        %v798 = vpop.trf.xlu0
        %v799 = vpop.trf.xlu0
        %v800 = vpop.trf.xlu0
        %v801 = vpop.trf.xlu0
        %v802 = vpop.trf.xlu0
        %v803 = vpop.trf.xlu0
        %v804 = vpop.trf.xlu0
        %v805 = vpop.trf.xlu0
        %v806 = vpop.trf.xlu0
        %v807 = vpop.trf.xlu0
        %v808 = vpop.trf.xlu0
        %v809 = vpop.trf.xlu0
        %s810 = smul.u32 %s23, 128
        %v811 = vlaneseq
        %v812 = vand.u32 %v811, 127
        %v813 = vstv %s810
        %v814 = vadd.s32 %v813, %v812
        %vm815 = vcmp.lt.s32.totalorder %v814, 300
        %v816 = vsel %vm815, %v794, -1e+30
        %817 = vst [vmem:[%s270] sm:$0x1] %v816
        %v818 = vld [vmem:[#allocation2] sm:$0x1]
        %vm819 = vcmask 1040384
        %v820 = vsel %vm819, %v816, -inf
        %821 = vmax.xlane.f32.xlu0 %v820
        %v822 = vpop.xlane.xlu0 %821
        %v823 = vmax.f32 %v818, %v822
        %v824 = vsub.f32 %v818, %v823
        %v825 = vmul.f32 %v824, 1.442695
        %v826 = vpow.pop %v825
        %828 = vset.pattern.permute.xlu0 0
        %829 = vperm.xlu0 %828, %v823
        %v830 = vpop.permute.xlu0 %829
        %v832 = vlaneseq
        %v833 = vshrl.u32 %v832, 7
        %v834 = vsub.s32 0, %v833
        %v835 = vrot.slane %v830, %v834
        %v836 = vsub.f32 %v816, %v835
        %v837 = vmul.f32 %v836, 1.442695
        %v838 = vpow.pop %v837
        %v839 = vld [vmem:[#allocation3] sm:$0x1]
        %v840 = vmul.f32 %v826, %v839
        %v841 = vsel %vm819, %v838, 0.0
        %842 = vadd.xlane.f32.xlu0 %v841
        %v843 = vpop.xlane.xlu0 %842
        %v844 = vadd.f32 %v840, %v843
        %vm845 = vcmask 0
        %846 = vst.msk [vmem:[#allocation3] sm:$0x1] %vm845, %v844
        %v847 = vld [vmem:[#allocation4] sm:$0x1]
        %849 = vset.pattern.permute.xlu0 0
        %850 = vperm.xlu0 %849, %v826
        %v851 = vpop.permute.xlu0 %850
        %v853 = vlaneseq
        %v854 = vshrl.u32 %v853, 7
        %v855 = vsub.s32 0, %v854
        %v856 = vrot.slane %v851, %v855
        %v857 = vmul.f32 %v856, %v847
        %858 = vmatprep.subr.mxu0 0.0
        %859 = vmatpush1.msra.mxu0 %v506
        %860 = vmatprep.subr.mxu0 0.0
        %861 = vmatpush1.msra.mxu0 %v507
        %862 = vmatprep.subr.mxu0 0.0
        %863 = vmatpush1.msra.mxu0 %v508
        %864 = vmatprep.subr.mxu0 0.0
        %865 = vmatpush1.msra.mxu0 %v509
        %866 = vmatprep.subr.mxu0 0.0
        %867 = vmatpush1.msra.mxu0 %v510
        %868 = vmatprep.subr.mxu0 0.0
        %869 = vmatpush1.msra.mxu0 %v511
        %870 = vmatprep.subr.mxu0 0.0
        %871 = vmatpush1.msra.mxu0 %v512
        %872 = vmatprep.subr.mxu0 0.0
        %873 = vmatpush1.msra.mxu0 %v513
        %874 = vmatprep.subr.mxu0 0.0
        %875 = vmatpush1.msra.mxu0 %v514
        %876 = vmatprep.subr.mxu0 0.0
        %877 = vmatpush1.msra.mxu0 %v515
        %878 = vmatprep.subr.mxu0 0.0
        %879 = vmatpush1.msra.mxu0 %v516
        %880 = vmatprep.subr.mxu0 0.0
        %881 = vmatpush1.msra.mxu0 %v517
        %882 = vmatprep.subr.mxu0 0.0
        %883 = vmatpush1.msra.mxu0 %v518
        %884 = vmatprep.subr.mxu0 0.0
        %885 = vmatpush1.msra.mxu0 %v519
        %886 = vmatprep.subr.mxu0 0.0
        %887 = vmatpush1.msra.mxu0 %v520
        %888 = vmatprep.subr.mxu0 0.0
        %889 = vmatpush1.msra.mxu0 %v521
        %890 = vmatprep.subr.mxu0 0.0
        %891 = vmatpush1.msra.mxu0 0.0
        %892 = vmatprep.subr.mxu0 0.0
        %893 = vmatpush1.msra.mxu0 0.0
        %894 = vmatprep.subr.mxu0 0.0
        %895 = vmatpush1.msra.mxu0 0.0
        %896 = vmatprep.subr.mxu0 0.0
        %897 = vmatpush1.msra.mxu0 0.0
        %898 = vmatprep.subr.mxu0 0.0
        %899 = vmatpush1.msra.mxu0 0.0
        %900 = vmatprep.subr.mxu0 0.0
        %901 = vmatpush1.msra.mxu0 0.0
        %902 = vmatprep.subr.mxu0 0.0
        %903 = vmatpush1.msra.mxu0 0.0
        %904 = vmatprep.subr.mxu0 0.0
        %905 = vmatpush1.msra.mxu0 0.0
        %906 = vmatprep.subr.mxu0 0.0
        %907 = vmatpush1.msra.mxu0 0.0
        %908 = vmatprep.subr.mxu0 0.0
        %909 = vmatpush1.msra.mxu0 0.0
        %910 = vmatprep.subr.mxu0 0.0
        %911 = vmatpush1.msra.mxu0 0.0
        %912 = vmatprep.subr.mxu0 0.0
        %913 = vmatpush1.msra.mxu0 0.0
        %914 = vmatprep.subr.mxu0 0.0
        %915 = vmatpush1.msra.mxu0 0.0
        %916 = vmatprep.subr.mxu0 0.0
        %917 = vmatpush1.msra.mxu0 0.0
        %918 = vmatprep.subr.mxu0 0.0
        %919 = vmatpush1.msra.mxu0 0.0
        %920 = vmatprep.subr.mxu0 0.0
        %921 = vmatpush1.msra.mxu0 0.0
        %922 = vmatprep.mubr.f32.mxu0 0.0
        %923 = vmatmul.mubr.f32.gmra.mrb[0].mxu0 %v838
        %v924 = vpop.f32.mrb[0].mxu0
        %v925 = vadd.f32 0.0, %v924
        %v926 = vpop.f32.mrb[0].mxu0
        %927 = vdwg.mxu0
        %v928 = vadd.f32 %v857, %v925
        %929 = vst [vmem:[#allocation4] sm:$0x1] %v928
        %930 = vst.msk [vmem:[#allocation2] sm:$0x1] %vm845, %v823
        %p931 = scmp.eq.s32.totalorder %s23, 2
        // Predicated region
        $region49: #{tpu_custom_call.1} parent=43 // pred_check
          %p932 = pneg %p931
        $region50: #{tpu_custom_call.1} parent=43 // pred_check_branch
          %934 = sbr.rel (%p932) target = $region52
        $region51: #{tpu_custom_call.1} parent=43 // pred_region
          %v935 = vld [vmem:[#allocation4] sm:$0x1]
          %v936 = vld [vmem:[#allocation3] sm:$0x1]
          %938 = vset.pattern.permute.xlu0 0
          %939 = vperm.xlu0 %938, %v936
          %v940 = vpop.permute.xlu0 %939
          %v942 = vlaneseq
          %v943 = vshrl.u32 %v942, 7
          %v944 = vsub.s32 0, %v943
          %v945 = vrot.slane %v940, %v944
          %v946 = vrcp.pop %v945
          %v947 = vmul.f32 %v935, %v946
          %948 = vst [vmem:[#allocation5] sm:$0x1] %v947
        $region52: #{tpu_custom_call.1} parent=43 // pred_fallthru
          _
        %s949 = sand.u32 %s183, 1
        %s950 = scalar_lea.sflag [#allocation8], %s949
        %s951 = sand.u32 %s183, 1
        %s952 = scalar_lea.vmem [#allocation7], %s951
        // Predicated region
        $region53: #{tpu_custom_call.1} parent=43 // pred_check
          %p953 = pneg %p167
        $region54: #{tpu_custom_call.1} parent=43 // pred_check_branch
          %955 = sbr.rel (%p953) target = $region56
        $region55: #{tpu_custom_call.1} parent=43 // pred_region
          %s957 = ssub.s32 16, 16
          %958 = vsyncadd [#allocation6], %s957
          %s960 = sshll.u32 [#allocation5], 4
          %s961 = int_to_ptr.vmem [resolvable:$true] %s960
          %963 = dma.vmem_to_hbm [thread:$0]  %s961, 16, %s6, [#allocation6]
        $region56: #{tpu_custom_call.1} parent=43 // pred_fallthru
          _
        // Predicated region
        $region57: #{tpu_custom_call.1} parent=43 // pred_check
          %p964 = pneg %p193
        $region58: #{tpu_custom_call.1} parent=43 // pred_check_branch
          %966 = sbr.rel (%p964) target = $region60
        $region59: #{tpu_custom_call.1} parent=43 // pred_region
          %s968 = ssub.s32 16, 16
          %969 = vsyncadd %s950, %s968
          %s970 = smul.addr %s23, 16
          %s971 = scalar_lea.hbm %s7, %s970
          %s973 = sshll.u32 %s952, 4
          %s974 = int_to_ptr.vmem [resolvable:$true] %s973
          %976 = dma.vmem_to_hbm [thread:$0]  %s974, 16, %s971, %s950
        $region60: #{tpu_custom_call.1} parent=43 // pred_fallthru
          _
        // Predicated region
        $region61: #{tpu_custom_call.1} parent=43 // pred_check
          %p977 = pneg %p167
        $region62: #{tpu_custom_call.1} parent=43 // pred_check_branch
          %979 = sbr.rel (%p977) target = $region64
        $region63: #{tpu_custom_call.1} parent=43 // pred_region
          %980 = dma.done [#allocation6], 16
        $region64: #{tpu_custom_call.1} parent=43 // pred_fallthru
          _
      $region44: #{tpu_custom_call.1} parent=5 // pred_fallthru
        _
      %p981 = scmp.le.s32.totalorder 2, %s18
      // Predicated region
      $region65: #{tpu_custom_call.1} parent=5 // pred_check
        %p982 = pneg %p981
      $region66: #{tpu_custom_call.1} parent=5 // pred_check_branch
        %984 = sbr.rel (%p982) target = $region68
      $region67: #{tpu_custom_call.1} parent=5 // pred_region
        %s985 = ssub.s32 %s18, 2
        // Predicated region
        $region69: #{tpu_custom_call.1} parent=67 // pred_check
          %p986 = pneg %p199
        $region70: #{tpu_custom_call.1} parent=67 // pred_check_branch
          %988 = sbr.rel (%p986) target = $region72
        $region71: #{tpu_custom_call.1} parent=67 // pred_region
          %s989 = sand.u32 %s184, 1
          %s990 = scalar_lea.sflag [#allocation8], %s989
          %s991 = sand.u32 %s184, 1
          %s992 = scalar_lea.vmem [#allocation7], %s991
          %993 = dma.done %s990, 16
        $region72: #{tpu_custom_call.1} parent=67 // pred_fallthru
          _
      $region68: #{tpu_custom_call.1} parent=5 // pred_fallthru
        _
    $region6: #{tpu_custom_call.1} parent=1 // loop_footer
      %s22 = sadd.s32 1, %s18
    $region7: #{tpu_custom_call.1} parent=1 // loop_footer_branch
      %17 = sbr.rel target = $region3
    $region8: #{tpu_custom_call.1} parent=1 // loop_exit
      _
    %994 = vsyncpa [#allocation6], 1
    %s995 = scalar_lea.sflag [#allocation6], 1
    %996 = vsyncpa %s995, 1
    %997 = vsyncpa [#allocation8], 1
    %s998 = scalar_lea.sflag [#allocation8], 1
    %999 = vsyncpa %s998, 1

</llo_original>
